<compile_context>
chip_gen: v7x
topology: tpu7x:2x2x1
jax: 0.10.0
libtpu: 0.0.40
codegen_flags: <defaults>
</compile_context>

<pallas_src>
import jax
import jax.numpy as jnp
from jax.experimental import pallas as pl
from jax.experimental.pallas import tpu as pltpu

INPUT_SIZE = 9
HIDDEN = 64
FC1 = 8
OUT = 5
LANE = 128

# Packed LSTM weight layout (rows, all x 4H lanes), bf16:
#   [0  : 9  )  W_ih^T   (INPUT_SIZE rows)
#   [16 : 80 )  W_hh^T   (offset 16 => aligned even under bf16 sublane packing)
WIH_OFF = 0
WHH_OFF = 16
LSTM_W_ROWS = WHH_OFF + HIDDEN            # 80

# Packed head layout (rows x 128 lanes), f32:
#   [0   : 64 )  W1^T  (64 x 8 in cols 0:8)
#   [64  : 65 )  b1    (cols 0:8)
#   [72  : 200)  W2 padded to (128, 128)  (real values in rows 72:80, cols 0:5)
#   [200 : 201)  b2    (cols 0:5)
HEAD_W1_OFF = 0
HEAD_B1_OFF = HIDDEN                      # 64
HEAD_W2_OFF = HEAD_B1_OFF + 8             # 72
HEAD_B2_OFF = HEAD_W2_OFF + LANE          # 200
HEAD_ROWS = HEAD_B2_OFF + 8               # 208


def lstm_kernel(x_ref, wl_ref, bl_ref, hd_ref, out_ref):
    """x_ref: (T*BP, I) bf16 time-major; wl_ref: packed bf16 LSTM weights;
    bl_ref: (1, 4H) f32 summed bias; hd_ref: packed f32 head; out_ref: (BP, 128) f32."""
    BP = out_ref.shape[0]
    T = x_ref.shape[0] // BP
    H = HIDDEN

    wih = wl_ref[WIH_OFF:WIH_OFF + INPUT_SIZE, :]        # (I, 4H) bf16
    whh = wl_ref[WHH_OFF:WHH_OFF + H, :]                 # (H, 4H) bf16

    # Hoisted input projection: one MXU call over all T*BP rows (time-major),
    # f32 accumulation, bias added once.
    xw = (jnp.dot(x_ref[...], wih, preferred_element_type=jnp.float32)
          + bl_ref[...])                                 # (T*BP, 4H) f32

    # Recurrent state lives in vregs across the fully-unrolled time loop.
    h = jnp.zeros((BP, H), jnp.float32)
    c = jnp.zeros((BP, H), jnp.float32)

    for t in range(T):
        # (BP, 4H) — slice start t*BP is a multiple of 8 (sublane-aligned).
        gates = xw[t * BP:(t + 1) * BP, :] + jnp.dot(
            h.astype(jnp.bfloat16), whh, preferred_element_type=jnp.float32)
        # Fused nonlinearities: one full-width sigmoid, one tanh on the g slice.
        sg = jax.nn.sigmoid(gates)                       # (BP, 4H)
        i_g = sg[:, 0 * H:1 * H]
        f_g = sg[:, 1 * H:2 * H]
        o_g = sg[:, 3 * H:4 * H]
        g_g = jnp.tanh(gates[:, 2 * H:3 * H])
        c = f_g * c + i_g * g_g
        h = o_g * jnp.tanh(c)

    # Fused, lane-dense MLP head on the last hidden state (f32, one-shot).
    w1 = hd_ref[HEAD_W1_OFF:HEAD_W1_OFF + H, :]          # (64, 128)
    b1 = hd_ref[HEAD_B1_OFF:HEAD_B1_OFF + 1, :]          # (1, 128)
    w2 = hd_ref[HEAD_W2_OFF:HEAD_W2_OFF + LANE, :]       # (128, 128)
    b2 = hd_ref[HEAD_B2_OFF:HEAD_B2_OFF + 1, :]          # (1, 128)
    z1 = jnp.maximum(
        jnp.dot(h, w1, preferred_element_type=jnp.float32) + b1, 0.0)   # (BP, 128)
    out_ref[...] = jnp.dot(z1, w2, preferred_element_type=jnp.float32) + b2


@jax.jit
def lstm_model_forward(x, params):
    """x: (B, T, INPUT_SIZE) float32, batch_first (matches PyTorch)."""
    B, T, I = x.shape
    BP = ((B + 7) // 8) * 8   # pad batch to the f32 sublane tile

    # Single fused wrapper op: pad batch -> time-major relayout -> bf16 cast
    # of a ~0.6 KB tensor.  (Padding is required anyway; XLA fuses the rest.)
    x_tm = jnp.zeros((T, BP, I), jnp.bfloat16)
    x_tm = x_tm.at[:, :B, :].set(jnp.swapaxes(x, 0, 1).astype(jnp.bfloat16))
    x_tm = x_tm.reshape(T * BP, I)

    vmem = pl.BlockSpec(memory_space=pltpu.MemorySpace.VMEM)
    out_padded = pl.pallas_call(
        lstm_kernel,
        out_shape=jax.ShapeDtypeStruct((BP, LANE), jnp.float32),
        in_specs=[vmem, vmem, vmem, vmem],
        out_specs=vmem,
    )(x_tm, params["w_lstm"], params["b_lstm"], params["head"])
    return out_padded[:B, :OUT]


def init_params(key):
    """Deterministic synthetic parameters with the same shapes as the PyTorch module."""
    ks = jax.random.split(key, 8)
    H, I = HIDDEN, INPUT_SIZE
    # PyTorch stores W_ih: (4H, I), W_hh: (4H, H), gate order (i, f, g, o).
    w_ih = jax.random.uniform(ks[0], (4 * H, I), jnp.float32, -0.1, 0.1)
    w_hh = jax.random.uniform(ks[1], (4 * H, H), jnp.float32, -0.1, 0.1)
    b_ih = jax.random.uniform(ks[2], (4 * H,), jnp.float32, -0.1, 0.1)
    b_hh = jax.random.uniform(ks[3], (4 * H,), jnp.float32, -0.1, 0.1)
    w1 = jax.random.uniform(ks[4], (FC1, H), jnp.float32, -0.1, 0.1)
    b1 = jax.random.uniform(ks[5], (FC1,), jnp.float32, -0.1, 0.1)
    w2 = jax.random.uniform(ks[6], (OUT, FC1), jnp.float32, -0.1, 0.1)
    b2 = jax.random.uniform(ks[7], (OUT,), jnp.float32, -0.1, 0.1)

    # Packed bf16 LSTM weights (matmul operands only; bias stays f32).
    w_lstm = jnp.zeros((LSTM_W_ROWS, 4 * H), jnp.float32)
    w_lstm = w_lstm.at[WIH_OFF:WIH_OFF + I, :].set(w_ih.T)
    w_lstm = w_lstm.at[WHH_OFF:WHH_OFF + H, :].set(w_hh.T)
    w_lstm = w_lstm.astype(jnp.bfloat16)
    b_lstm = (b_ih + b_hh).reshape(1, 4 * H)

    # Packed lane-dense (128-wide) head.
    head = jnp.zeros((HEAD_ROWS, LANE), jnp.float32)
    head = head.at[HEAD_W1_OFF:HEAD_W1_OFF + H, :FC1].set(w1.T)
    head = head.at[HEAD_B1_OFF, :FC1].set(b1)
    head = head.at[HEAD_W2_OFF:HEAD_W2_OFF + FC1, :OUT].set(w2.T)
    head = head.at[HEAD_B2_OFF, :OUT].set(b2)

    return {
        # kernel operands
        "w_lstm": w_lstm, "b_lstm": b_lstm, "head": head,
        # unpacked f32 copies for the pure-JAX reference
        "w_ih_t": w_ih.T, "w_hh_t": w_hh.T, "b": b_lstm,
        "w1_t": w1.T, "b1": b1.reshape(1, FC1),
        "w2_t": w2.T, "b2": b2.reshape(1, OUT),
    }


def reference_forward(x, params):
    """Pure-JAX f32 reference of the PyTorch forward for verification."""
    B, T, I = x.shape
    H = HIDDEN
    h = jnp.zeros((B, H), jnp.float32)
    c = jnp.zeros((B, H), jnp.float32)
    for t in range(T):
        gates = x[:, t, :] @ params["w_ih_t"] + h @ params["w_hh_t"] + params["b"]
        i_g = jax.nn.sigmoid(gates[:, 0 * H:1 * H])
        f_g = jax.nn.sigmoid(gates[:, 1 * H:2 * H])
        g_g = jnp.tanh(gates[:, 2 * H:3 * H])
        o_g = jax.nn.sigmoid(gates[:, 3 * H:4 * H])
        c = f_g * c + i_g * g_g
        h = o_g * jnp.tanh(c)
    z1 = jnp.maximum(h @ params["w1_t"] + params["b1"], 0.0)
    return z1 @ params["w2_t"] + params["b2"]


if __name__ == "__main__":
    key = jax.random.PRNGKey(0)
    k_x, k_p = jax.random.split(key)

    B, T = 2, 8
    x = jax.random.normal(k_x, (B, T, INPUT_SIZE), jnp.float32)
    params = init_params(k_p)

    out = jax.block_until_ready(lstm_model_forward(x, params))
    assert out.shape == (B, OUT), out.shape

    ref = jax.block_until_ready(reference_forward(x, params))
    # bf16 matmul inputs (f32 accumulation / f32 gate math) => tolerance-level drift.
    assert jnp.allclose(out, ref, atol=1e-2, rtol=1e-2), (out, ref)

    print("KERNEL_OK")
</pallas_src>

<mosaic_0001>
module attributes {stable_mosaic.version = 11 : i64} {
  func.func @lstm_kernel(%arg0: memref<64x9xbf16, #tpu.memory_space<vmem>>, %arg1: memref<80x256xbf16, #tpu.memory_space<vmem>>, %arg2: memref<1x256xf32, #tpu.memory_space<vmem>>, %arg3: memref<208x128xf32, #tpu.memory_space<vmem>>, %arg4: memref<8x128xf32, #tpu.memory_space<vmem>>) attributes {dimension_semantics = [], scalar_prefetch = 0 : i64, scratch_operands = 0 : i64, tpu.core_type = #tpu.core_type<tc>} {
    %c0 = arith.constant 0 : index
    %c0_0 = arith.constant 0 : index
    %0 = vector.load %arg1[%c0, %c0_0] : memref<80x256xbf16, #tpu.memory_space<vmem>>, vector<9x256xbf16>
    %c16 = arith.constant 16 : index
    %c0_1 = arith.constant 0 : index
    %1 = vector.load %arg1[%c16, %c0_1] : memref<80x256xbf16, #tpu.memory_space<vmem>>, vector<64x256xbf16>
    %c0_2 = arith.constant 0 : index
    %c0_3 = arith.constant 0 : index
    %2 = vector.load %arg0[%c0_2, %c0_3] : memref<64x9xbf16, #tpu.memory_space<vmem>>, vector<64x9xbf16>
    %cst = arith.constant dense<0.000000e+00> : vector<64x256xf32>
    %3 = tpu.matmul %2, %0, %cst {dimension_numbers = #tpu.dot_dimension_numbers<[1], [0], [0], [1], [0, 0, 1, 1], [], []>} : vector<64x9xbf16>, vector<9x256xbf16>, vector<64x256xf32> -> vector<64x256xf32>
    %c0_4 = arith.constant 0 : index
    %c0_5 = arith.constant 0 : index
    %4 = vector.load %arg2[%c0_4, %c0_5] : memref<1x256xf32, #tpu.memory_space<vmem>>, vector<1x256xf32>
    %5 = vector.broadcast %4 : vector<1x256xf32> to vector<64x256xf32>
    %6 = arith.addf %3, %5 : vector<64x256xf32>
    %cst_6 = arith.constant 0.000000e+00 : f32
    %7 = vector.broadcast %cst_6 : f32 to vector<8x64xf32>
    %cst_7 = arith.constant 0.000000e+00 : f32
    %8 = vector.broadcast %cst_7 : f32 to vector<8x64xf32>
    %9 = vector.extract_strided_slice %6 {offsets = [0, 0], sizes = [8, 256], strides = [1, 1]} : vector<64x256xf32> to vector<8x256xf32>
    %10 = arith.truncf %7 : vector<8x64xf32> to vector<8x64xbf16>
    %cst_8 = arith.constant dense<0.000000e+00> : vector<8x256xf32>
    %11 = tpu.matmul %10, %1, %cst_8 {dimension_numbers = #tpu.dot_dimension_numbers<[1], [0], [0], [1], [0, 0, 1, 1], [], []>} : vector<8x64xbf16>, vector<64x256xbf16>, vector<8x256xf32> -> vector<8x256xf32>
    %12 = arith.addf %9, %11 : vector<8x256xf32>
    %13 = arith.negf %12 : vector<8x256xf32>
    %14 = math.exp %13 : vector<8x256xf32>
    %cst_9 = arith.constant 1.000000e+00 : f32
    %15 = vector.broadcast %cst_9 : f32 to vector<8x256xf32>
    %16 = arith.addf %15, %14 : vector<8x256xf32>
    %17 = arith.divf %15, %16 : vector<8x256xf32>
    %18 = vector.extract_strided_slice %17 {offsets = [0, 0], sizes = [8, 64], strides = [1, 1]} : vector<8x256xf32> to vector<8x64xf32>
    %19 = vector.extract_strided_slice %17 {offsets = [0, 64], sizes = [8, 64], strides = [1, 1]} : vector<8x256xf32> to vector<8x64xf32>
    %20 = vector.extract_strided_slice %17 {offsets = [0, 192], sizes = [8, 64], strides = [1, 1]} : vector<8x256xf32> to vector<8x64xf32>
    %21 = vector.extract_strided_slice %12 {offsets = [0, 128], sizes = [8, 64], strides = [1, 1]} : vector<8x256xf32> to vector<8x64xf32>
    %22 = math.tanh %21 : vector<8x64xf32>
    %23 = arith.mulf %19, %8 : vector<8x64xf32>
    %24 = arith.mulf %18, %22 : vector<8x64xf32>
    %25 = arith.addf %23, %24 : vector<8x64xf32>
    %26 = math.tanh %25 : vector<8x64xf32>
    %27 = arith.mulf %20, %26 : vector<8x64xf32>
    %28 = vector.extract_strided_slice %6 {offsets = [8, 0], sizes = [8, 256], strides = [1, 1]} : vector<64x256xf32> to vector<8x256xf32>
    %29 = arith.truncf %27 : vector<8x64xf32> to vector<8x64xbf16>
    %cst_10 = arith.constant dense<0.000000e+00> : vector<8x256xf32>
    %30 = tpu.matmul %29, %1, %cst_10 {dimension_numbers = #tpu.dot_dimension_numbers<[1], [0], [0], [1], [0, 0, 1, 1], [], []>} : vector<8x64xbf16>, vector<64x256xbf16>, vector<8x256xf32> -> vector<8x256xf32>
    %31 = arith.addf %28, %30 : vector<8x256xf32>
    %32 = arith.negf %31 : vector<8x256xf32>
    %33 = math.exp %32 : vector<8x256xf32>
    %cst_11 = arith.constant 1.000000e+00 : f32
    %34 = vector.broadcast %cst_11 : f32 to vector<8x256xf32>
    %35 = arith.addf %34, %33 : vector<8x256xf32>
    %36 = arith.divf %34, %35 : vector<8x256xf32>
    %37 = vector.extract_strided_slice %36 {offsets = [0, 0], sizes = [8, 64], strides = [1, 1]} : vector<8x256xf32> to vector<8x64xf32>
    %38 = vector.extract_strided_slice %36 {offsets = [0, 64], sizes = [8, 64], strides = [1, 1]} : vector<8x256xf32> to vector<8x64xf32>
    %39 = vector.extract_strided_slice %36 {offsets = [0, 192], sizes = [8, 64], strides = [1, 1]} : vector<8x256xf32> to vector<8x64xf32>
    %40 = vector.extract_strided_slice %31 {offsets = [0, 128], sizes = [8, 64], strides = [1, 1]} : vector<8x256xf32> to vector<8x64xf32>
    %41 = math.tanh %40 : vector<8x64xf32>
    %42 = arith.mulf %38, %25 : vector<8x64xf32>
    %43 = arith.mulf %37, %41 : vector<8x64xf32>
    %44 = arith.addf %42, %43 : vector<8x64xf32>
    %45 = math.tanh %44 : vector<8x64xf32>
    %46 = arith.mulf %39, %45 : vector<8x64xf32>
    %47 = vector.extract_strided_slice %6 {offsets = [16, 0], sizes = [8, 256], strides = [1, 1]} : vector<64x256xf32> to vector<8x256xf32>
    %48 = arith.truncf %46 : vector<8x64xf32> to vector<8x64xbf16>
    %cst_12 = arith.constant dense<0.000000e+00> : vector<8x256xf32>
    %49 = tpu.matmul %48, %1, %cst_12 {dimension_numbers = #tpu.dot_dimension_numbers<[1], [0], [0], [1], [0, 0, 1, 1], [], []>} : vector<8x64xbf16>, vector<64x256xbf16>, vector<8x256xf32> -> vector<8x256xf32>
    %50 = arith.addf %47, %49 : vector<8x256xf32>
    %51 = arith.negf %50 : vector<8x256xf32>
    %52 = math.exp %51 : vector<8x256xf32>
    %cst_13 = arith.constant 1.000000e+00 : f32
    %53 = vector.broadcast %cst_13 : f32 to vector<8x256xf32>
    %54 = arith.addf %53, %52 : vector<8x256xf32>
    %55 = arith.divf %53, %54 : vector<8x256xf32>
    %56 = vector.extract_strided_slice %55 {offsets = [0, 0], sizes = [8, 64], strides = [1, 1]} : vector<8x256xf32> to vector<8x64xf32>
    %57 = vector.extract_strided_slice %55 {offsets = [0, 64], sizes = [8, 64], strides = [1, 1]} : vector<8x256xf32> to vector<8x64xf32>
    %58 = vector.extract_strided_slice %55 {offsets = [0, 192], sizes = [8, 64], strides = [1, 1]} : vector<8x256xf32> to vector<8x64xf32>
    %59 = vector.extract_strided_slice %50 {offsets = [0, 128], sizes = [8, 64], strides = [1, 1]} : vector<8x256xf32> to vector<8x64xf32>
    %60 = math.tanh %59 : vector<8x64xf32>
    %61 = arith.mulf %57, %44 : vector<8x64xf32>
    %62 = arith.mulf %56, %60 : vector<8x64xf32>
    %63 = arith.addf %61, %62 : vector<8x64xf32>
    %64 = math.tanh %63 : vector<8x64xf32>
    %65 = arith.mulf %58, %64 : vector<8x64xf32>
    %66 = vector.extract_strided_slice %6 {offsets = [24, 0], sizes = [8, 256], strides = [1, 1]} : vector<64x256xf32> to vector<8x256xf32>
    %67 = arith.truncf %65 : vector<8x64xf32> to vector<8x64xbf16>
    %cst_14 = arith.constant dense<0.000000e+00> : vector<8x256xf32>
    %68 = tpu.matmul %67, %1, %cst_14 {dimension_numbers = #tpu.dot_dimension_numbers<[1], [0], [0], [1], [0, 0, 1, 1], [], []>} : vector<8x64xbf16>, vector<64x256xbf16>, vector<8x256xf32> -> vector<8x256xf32>
    %69 = arith.addf %66, %68 : vector<8x256xf32>
    %70 = arith.negf %69 : vector<8x256xf32>
    %71 = math.exp %70 : vector<8x256xf32>
    %cst_15 = arith.constant 1.000000e+00 : f32
    %72 = vector.broadcast %cst_15 : f32 to vector<8x256xf32>
    %73 = arith.addf %72, %71 : vector<8x256xf32>
    %74 = arith.divf %72, %73 : vector<8x256xf32>
    %75 = vector.extract_strided_slice %74 {offsets = [0, 0], sizes = [8, 64], strides = [1, 1]} : vector<8x256xf32> to vector<8x64xf32>
    %76 = vector.extract_strided_slice %74 {offsets = [0, 64], sizes = [8, 64], strides = [1, 1]} : vector<8x256xf32> to vector<8x64xf32>
    %77 = vector.extract_strided_slice %74 {offsets = [0, 192], sizes = [8, 64], strides = [1, 1]} : vector<8x256xf32> to vector<8x64xf32>
    %78 = vector.extract_strided_slice %69 {offsets = [0, 128], sizes = [8, 64], strides = [1, 1]} : vector<8x256xf32> to vector<8x64xf32>
    %79 = math.tanh %78 : vector<8x64xf32>
    %80 = arith.mulf %76, %63 : vector<8x64xf32>
    %81 = arith.mulf %75, %79 : vector<8x64xf32>
    %82 = arith.addf %80, %81 : vector<8x64xf32>
    %83 = math.tanh %82 : vector<8x64xf32>
    %84 = arith.mulf %77, %83 : vector<8x64xf32>
    %85 = vector.extract_strided_slice %6 {offsets = [32, 0], sizes = [8, 256], strides = [1, 1]} : vector<64x256xf32> to vector<8x256xf32>
    %86 = arith.truncf %84 : vector<8x64xf32> to vector<8x64xbf16>
    %cst_16 = arith.constant dense<0.000000e+00> : vector<8x256xf32>
    %87 = tpu.matmul %86, %1, %cst_16 {dimension_numbers = #tpu.dot_dimension_numbers<[1], [0], [0], [1], [0, 0, 1, 1], [], []>} : vector<8x64xbf16>, vector<64x256xbf16>, vector<8x256xf32> -> vector<8x256xf32>
    %88 = arith.addf %85, %87 : vector<8x256xf32>
    %89 = arith.negf %88 : vector<8x256xf32>
    %90 = math.exp %89 : vector<8x256xf32>
    %cst_17 = arith.constant 1.000000e+00 : f32
    %91 = vector.broadcast %cst_17 : f32 to vector<8x256xf32>
    %92 = arith.addf %91, %90 : vector<8x256xf32>
    %93 = arith.divf %91, %92 : vector<8x256xf32>
    %94 = vector.extract_strided_slice %93 {offsets = [0, 0], sizes = [8, 64], strides = [1, 1]} : vector<8x256xf32> to vector<8x64xf32>
    %95 = vector.extract_strided_slice %93 {offsets = [0, 64], sizes = [8, 64], strides = [1, 1]} : vector<8x256xf32> to vector<8x64xf32>
    %96 = vector.extract_strided_slice %93 {offsets = [0, 192], sizes = [8, 64], strides = [1, 1]} : vector<8x256xf32> to vector<8x64xf32>
    %97 = vector.extract_strided_slice %88 {offsets = [0, 128], sizes = [8, 64], strides = [1, 1]} : vector<8x256xf32> to vector<8x64xf32>
    %98 = math.tanh %97 : vector<8x64xf32>
    %99 = arith.mulf %95, %82 : vector<8x64xf32>
    %100 = arith.mulf %94, %98 : vector<8x64xf32>
    %101 = arith.addf %99, %100 : vector<8x64xf32>
    %102 = math.tanh %101 : vector<8x64xf32>
    %103 = arith.mulf %96, %102 : vector<8x64xf32>
    %104 = vector.extract_strided_slice %6 {offsets = [40, 0], sizes = [8, 256], strides = [1, 1]} : vector<64x256xf32> to vector<8x256xf32>
    %105 = arith.truncf %103 : vector<8x64xf32> to vector<8x64xbf16>
    %cst_18 = arith.constant dense<0.000000e+00> : vector<8x256xf32>
    %106 = tpu.matmul %105, %1, %cst_18 {dimension_numbers = #tpu.dot_dimension_numbers<[1], [0], [0], [1], [0, 0, 1, 1], [], []>} : vector<8x64xbf16>, vector<64x256xbf16>, vector<8x256xf32> -> vector<8x256xf32>
    %107 = arith.addf %104, %106 : vector<8x256xf32>
    %108 = arith.negf %107 : vector<8x256xf32>
    %109 = math.exp %108 : vector<8x256xf32>
    %cst_19 = arith.constant 1.000000e+00 : f32
    %110 = vector.broadcast %cst_19 : f32 to vector<8x256xf32>
    %111 = arith.addf %110, %109 : vector<8x256xf32>
    %112 = arith.divf %110, %111 : vector<8x256xf32>
    %113 = vector.extract_strided_slice %112 {offsets = [0, 0], sizes = [8, 64], strides = [1, 1]} : vector<8x256xf32> to vector<8x64xf32>
    %114 = vector.extract_strided_slice %112 {offsets = [0, 64], sizes = [8, 64], strides = [1, 1]} : vector<8x256xf32> to vector<8x64xf32>
    %115 = vector.extract_strided_slice %112 {offsets = [0, 192], sizes = [8, 64], strides = [1, 1]} : vector<8x256xf32> to vector<8x64xf32>
    %116 = vector.extract_strided_slice %107 {offsets = [0, 128], sizes = [8, 64], strides = [1, 1]} : vector<8x256xf32> to vector<8x64xf32>
    %117 = math.tanh %116 : vector<8x64xf32>
    %118 = arith.mulf %114, %101 : vector<8x64xf32>
    %119 = arith.mulf %113, %117 : vector<8x64xf32>
    %120 = arith.addf %118, %119 : vector<8x64xf32>
    %121 = math.tanh %120 : vector<8x64xf32>
    %122 = arith.mulf %115, %121 : vector<8x64xf32>
    %123 = vector.extract_strided_slice %6 {offsets = [48, 0], sizes = [8, 256], strides = [1, 1]} : vector<64x256xf32> to vector<8x256xf32>
    %124 = arith.truncf %122 : vector<8x64xf32> to vector<8x64xbf16>
    %cst_20 = arith.constant dense<0.000000e+00> : vector<8x256xf32>
    %125 = tpu.matmul %124, %1, %cst_20 {dimension_numbers = #tpu.dot_dimension_numbers<[1], [0], [0], [1], [0, 0, 1, 1], [], []>} : vector<8x64xbf16>, vector<64x256xbf16>, vector<8x256xf32> -> vector<8x256xf32>
    %126 = arith.addf %123, %125 : vector<8x256xf32>
    %127 = arith.negf %126 : vector<8x256xf32>
    %128 = math.exp %127 : vector<8x256xf32>
    %cst_21 = arith.constant 1.000000e+00 : f32
    %129 = vector.broadcast %cst_21 : f32 to vector<8x256xf32>
    %130 = arith.addf %129, %128 : vector<8x256xf32>
    %131 = arith.divf %129, %130 : vector<8x256xf32>
    %132 = vector.extract_strided_slice %131 {offsets = [0, 0], sizes = [8, 64], strides = [1, 1]} : vector<8x256xf32> to vector<8x64xf32>
    %133 = vector.extract_strided_slice %131 {offsets = [0, 64], sizes = [8, 64], strides = [1, 1]} : vector<8x256xf32> to vector<8x64xf32>
    %134 = vector.extract_strided_slice %131 {offsets = [0, 192], sizes = [8, 64], strides = [1, 1]} : vector<8x256xf32> to vector<8x64xf32>
    %135 = vector.extract_strided_slice %126 {offsets = [0, 128], sizes = [8, 64], strides = [1, 1]} : vector<8x256xf32> to vector<8x64xf32>
    %136 = math.tanh %135 : vector<8x64xf32>
    %137 = arith.mulf %133, %120 : vector<8x64xf32>
    %138 = arith.mulf %132, %136 : vector<8x64xf32>
    %139 = arith.addf %137, %138 : vector<8x64xf32>
    %140 = math.tanh %139 : vector<8x64xf32>
    %141 = arith.mulf %134, %140 : vector<8x64xf32>
    %142 = vector.extract_strided_slice %6 {offsets = [56, 0], sizes = [8, 256], strides = [1, 1]} : vector<64x256xf32> to vector<8x256xf32>
    %143 = arith.truncf %141 : vector<8x64xf32> to vector<8x64xbf16>
    %cst_22 = arith.constant dense<0.000000e+00> : vector<8x256xf32>
    %144 = tpu.matmul %143, %1, %cst_22 {dimension_numbers = #tpu.dot_dimension_numbers<[1], [0], [0], [1], [0, 0, 1, 1], [], []>} : vector<8x64xbf16>, vector<64x256xbf16>, vector<8x256xf32> -> vector<8x256xf32>
    %145 = arith.addf %142, %144 : vector<8x256xf32>
    %146 = arith.negf %145 : vector<8x256xf32>
    %147 = math.exp %146 : vector<8x256xf32>
    %cst_23 = arith.constant 1.000000e+00 : f32
    %148 = vector.broadcast %cst_23 : f32 to vector<8x256xf32>
    %149 = arith.addf %148, %147 : vector<8x256xf32>
    %150 = arith.divf %148, %149 : vector<8x256xf32>
    %151 = vector.extract_strided_slice %150 {offsets = [0, 0], sizes = [8, 64], strides = [1, 1]} : vector<8x256xf32> to vector<8x64xf32>
    %152 = vector.extract_strided_slice %150 {offsets = [0, 64], sizes = [8, 64], strides = [1, 1]} : vector<8x256xf32> to vector<8x64xf32>
    %153 = vector.extract_strided_slice %150 {offsets = [0, 192], sizes = [8, 64], strides = [1, 1]} : vector<8x256xf32> to vector<8x64xf32>
    %154 = vector.extract_strided_slice %145 {offsets = [0, 128], sizes = [8, 64], strides = [1, 1]} : vector<8x256xf32> to vector<8x64xf32>
    %155 = math.tanh %154 : vector<8x64xf32>
    %156 = arith.mulf %152, %139 : vector<8x64xf32>
    %157 = arith.mulf %151, %155 : vector<8x64xf32>
    %158 = arith.addf %156, %157 : vector<8x64xf32>
    %159 = math.tanh %158 : vector<8x64xf32>
    %160 = arith.mulf %153, %159 : vector<8x64xf32>
    %c0_24 = arith.constant 0 : index
    %c0_25 = arith.constant 0 : index
    %161 = vector.load %arg3[%c0_24, %c0_25] : memref<208x128xf32, #tpu.memory_space<vmem>>, vector<64x128xf32>
    %c64 = arith.constant 64 : index
    %c0_26 = arith.constant 0 : index
    %162 = vector.load %arg3[%c64, %c0_26] : memref<208x128xf32, #tpu.memory_space<vmem>>, vector<1x128xf32>
    %c72 = arith.constant 72 : index
    %c0_27 = arith.constant 0 : index
    %163 = vector.load %arg3[%c72, %c0_27] : memref<208x128xf32, #tpu.memory_space<vmem>>, vector<128x128xf32>
    %c200 = arith.constant 200 : index
    %c0_28 = arith.constant 0 : index
    %164 = vector.load %arg3[%c200, %c0_28] : memref<208x128xf32, #tpu.memory_space<vmem>>, vector<1x128xf32>
    %cst_29 = arith.constant dense<0.000000e+00> : vector<8x128xf32>
    %165 = tpu.matmul %160, %161, %cst_29 {dimension_numbers = #tpu.dot_dimension_numbers<[1], [0], [0], [1], [0, 0, 1, 1], [], []>} : vector<8x64xf32>, vector<64x128xf32>, vector<8x128xf32> -> vector<8x128xf32>
    %166 = vector.broadcast %162 : vector<1x128xf32> to vector<8x128xf32>
    %167 = arith.addf %165, %166 : vector<8x128xf32>
    %cst_30 = arith.constant 0.000000e+00 : f32
    %168 = vector.broadcast %cst_30 : f32 to vector<8x128xf32>
    %169 = arith.maximumf %167, %168 : vector<8x128xf32>
    %cst_31 = arith.constant dense<0.000000e+00> : vector<8x128xf32>
    %170 = tpu.matmul %169, %163, %cst_31 {dimension_numbers = #tpu.dot_dimension_numbers<[1], [0], [0], [1], [0, 0, 1, 1], [], []>} : vector<8x128xf32>, vector<128x128xf32>, vector<8x128xf32> -> vector<8x128xf32>
    %171 = vector.broadcast %164 : vector<1x128xf32> to vector<8x128xf32>
    %172 = arith.addf %170, %171 : vector<8x128xf32>
    %c0_32 = arith.constant 0 : index
    %c0_33 = arith.constant 0 : index
    %173 = vector.load %arg4[%c0_32, %c0_33] : memref<8x128xf32, #tpu.memory_space<vmem>>, vector<8x128xf32>
    tpu.vector_store %arg4[%c0_32, %c0_33], %172 {strides = array<i32>} : memref<8x128xf32, #tpu.memory_space<vmem>>, vector<8x128xf32>,
    return
  }
}

</mosaic_0001>

<llo_original>
// kernel: lstm_model_forward.1
$region0: #{lstm_model_forward.1}
  #allocation0 [shape = 'u32[]', space=smem, size = 0x4, offset = 0x4, fixed_abs, tag = 'smem constant byte address 0x4 - core index']
  #allocation1 [shape = 'u32[144,128]{1,0:T(1,128)}', space=vmem, size = 0x12000, scoped, tag = 'internal scratch']
  %s0 = inlined_call_operand.vmem [shape: bf16[64,9], index: 0, kind: input, shape index: {}]
  %s1 = inlined_call_operand.vmem [shape: bf16[80,256], index: 1, kind: input, shape index: {}]
  %s2 = inlined_call_operand.vmem [shape: f32[1,256], index: 2, kind: input, shape index: {}]
  %s3 = inlined_call_operand.hbm [shape: f32[208,128], index: 3, kind: input, shape index: {}]
  %s4 = inlined_call_operand.vmem [shape: f32[8,128], index: 4, kind: output, shape index: {}]
  %s5 = sld [smem:[#allocation0]]
  $region30: #{lstm_model_forward.1} parent=0
    _
  %s7 = ssub.s32 1, %s5
  %s8 = scalar_select 0, %s7, %s5
  $region1: #{lstm_model_forward.1} parent=0
    #allocation2 [shape = 'u8[106496]{0}', space=vmem, size = 0x1a000, scoped, tag = 'input window, operand 3, single buffered']
    #allocation3 [shape = 's32[1]{0}', space=sflag, size = 0x4, scoped, tag = 'scoped memory for lstm_model_forward.1']
    %9 = vsyncpa [#allocation3], 0
    // Predicated region
    $region2: #{lstm_model_forward.1} parent=1 // pred_check
      _
    $region3: #{lstm_model_forward.1} parent=1 // pred_check_branch
      %11 = sbr.rel (0) target = $region5
    $region4: #{lstm_model_forward.1} parent=1 // pred_region
      _
    $region5: #{lstm_model_forward.1} parent=1 // pred_fallthru
      _
    // Predicated region
    $region6: #{lstm_model_forward.1} parent=1 // pred_check
      _
    $region7: #{lstm_model_forward.1} parent=1 // pred_check_branch
      %13 = sbr.rel (0) target = $region9
    $region8: #{lstm_model_forward.1} parent=1 // pred_region
      _
    $region9: #{lstm_model_forward.1} parent=1 // pred_fallthru
      _
    // Predicated region
    $region10: #{lstm_model_forward.1} parent=1 // pred_check
      _
    $region11: #{lstm_model_forward.1} parent=1 // pred_check_branch
      %15 = sbr.rel (0) target = $region13
    $region12: #{lstm_model_forward.1} parent=1 // pred_region
      _
    $region13: #{lstm_model_forward.1} parent=1 // pred_fallthru
      _
    // Predicated region
    $region14: #{lstm_model_forward.1} parent=1 // pred_check
      _
    $region15: #{lstm_model_forward.1} parent=1 // pred_check_branch
      %17 = sbr.rel (0) target = $region17
    $region16: #{lstm_model_forward.1} parent=1 // pred_region
      %s19 = ssub.s32 3328, 3328
      %20 = vsyncadd [#allocation3], %s19
      %s21 = sshll.u32 [#allocation2], 4
      %s22 = int_to_ptr.vmem [resolvable:$true] %s21
      %27 = dma.hbm_to_vmem [thread:$0]  %s3, 3328, %s22, [#allocation3], 128, 128, 8
    $region17: #{lstm_model_forward.1} parent=1 // pred_fallthru
      _
    // Predicated region
    $region18: #{lstm_model_forward.1} parent=1 // pred_check
      _
    $region19: #{lstm_model_forward.1} parent=1 // pred_check_branch
      %29 = sbr.rel (0) target = $region21
    $region20: #{lstm_model_forward.1} parent=1 // pred_region
      %30 = dma.done [#allocation3], 3328
    $region21: #{lstm_model_forward.1} parent=1 // pred_fallthru
      _
    %v32 = vld [vmem:[%s1] sm:$0xff]
    %v33 = vld [vmem:[%s1 + $0x8] sm:$0x11]
    %v34 = vld [vmem:[%s1 + $0x10] sm:$0xff]
    %v35 = vld [vmem:[%s1 + $0x18] sm:$0xff]
    %v36 = vld [vmem:[%s1 + $0x20] sm:$0xff]
    %v37 = vld [vmem:[%s1 + $0x28] sm:$0xff]
    %v38 = vld [vmem:[%s1 + $0x30] sm:$0xff]
    %v39 = vld [vmem:[%s1 + $0x38] sm:$0xff]
    %v40 = vld [vmem:[%s1 + $0x40] sm:$0xff]
    %v41 = vld [vmem:[%s1 + $0x48] sm:$0xff]
    %v42 = vld [vmem:[%s0] sm:$0xf]
    %v43 = vld [vmem:[%s0 + $0x4] sm:$0xf]
    %v44 = vld [vmem:[%s0 + $0x8] sm:$0xf]
    %v45 = vld [vmem:[%s0 + $0xc] sm:$0xf]
    %v46 = vld [vmem:[%s0 + $0x10] sm:$0xf]
    %v47 = vld [vmem:[%s0 + $0x14] sm:$0xf]
    %v48 = vld [vmem:[%s0 + $0x18] sm:$0xf]
    %v49 = vld [vmem:[%s0 + $0x1c] sm:$0xf]
    %v50 = vld [vmem:[%s2] sm:$0x3]
    %v52 = vlaneseq
    %v53 = vshrl.u32 %v52, 7
    %v54 = vsub.s32 0, %v53
    %v55 = vrot.slane %v50, %v54
    %v56 = vlaneseq
    %v57 = vshrl.u32 %v56, 7
    %v58 = vsub.s32 1, %v57
    %v59 = vrot.slane %v50, %v58
    %v70 = vunpack.c.l.b16 %v42
    %v71 = vunpack.c.l.b16 %v43
    %v72 = vunpack.c.l.b16 %v44
    %v73 = vunpack.c.l.b16 %v45
    %v74 = vunpack.c.l.b16 %v46
    %v75 = vunpack.c.l.b16 %v47
    %v76 = vunpack.c.l.b16 %v48
    %v77 = vunpack.c.l.b16 %v49
    %v78 = vpack.c.b16 %v71, %v70
    %v79 = vpack.c.b16 %v73, %v72
    %v80 = vpack.c.b16 %v75, %v74
    %v81 = vpack.c.b16 %v77, %v76
    %v84 = vunpack.c.l.b16 %v32
    %v85 = vunpack.c.h.b16 %v32
    %v86 = vunpack.c.l.b16 %v33
    %v87 = vunpack.c.h.b16 %v33
    %v88 = vpack.c.b16 %v86, %v84
    %v89 = vpack.c.b16 %v87, %v85
    %vm90 = vcmask 72704
    %v92 = vsel %vm90, %v78, 0
    %v95 = vsel %vm90, %v79, 0
    %v98 = vsel %vm90, %v80, 0
    %v101 = vsel %vm90, %v81, 0
    %vm103 = vcmask 1043456
    %vm104 = vcmask 1044480
    %v105 = vsel %vm103, 4294967295, 65535
    %v106 = vsel %vm104, %v105, 0
    %v108 = vand.u32 %v88, %v106
    %v111 = vand.u32 %v89, %v106
    %113 = vmatprep.subr.bf16.mxu0 %v111
    %114 = vmatpush1.bf16.msra.mxu0 %v108
    %115 = vmatprep.subr.bf16.mxu0 0
    %116 = vmatpush1.bf16.msra.mxu0 0
    %117 = vmatprep.subr.bf16.mxu0 0
    %118 = vmatpush1.bf16.msra.mxu0 0
    %119 = vmatprep.subr.bf16.mxu0 0
    %120 = vmatpush1.bf16.msra.mxu0 0
    %121 = vmatprep.subr.bf16.mxu0 0
    %122 = vmatpush1.bf16.msra.mxu0 0
    %123 = vmatprep.subr.bf16.mxu0 0
    %124 = vmatpush1.bf16.msra.mxu0 0
    %125 = vmatprep.subr.bf16.mxu0 0
    %126 = vmatpush1.bf16.msra.mxu0 0
    %127 = vmatprep.subr.bf16.mxu0 0
    %128 = vmatpush1.bf16.msra.mxu0 0
    %129 = vmatprep.subr.bf16.mxu0 0
    %130 = vmatpush1.bf16.msra.mxu0 0
    %131 = vmatprep.subr.bf16.mxu0 0
    %132 = vmatpush1.bf16.msra.mxu0 0
    %133 = vmatprep.subr.bf16.mxu0 0
    %134 = vmatpush1.bf16.msra.mxu0 0
    %135 = vmatprep.subr.bf16.mxu0 0
    %136 = vmatpush1.bf16.msra.mxu0 0
    %137 = vmatprep.subr.bf16.mxu0 0
    %138 = vmatpush1.bf16.msra.mxu0 0
    %139 = vmatprep.subr.bf16.mxu0 0
    %140 = vmatpush1.bf16.msra.mxu0 0
    %141 = vmatprep.subr.bf16.mxu0 0
    %142 = vmatpush1.bf16.msra.mxu0 0
    %143 = vmatprep.subr.bf16.mxu0 0
    %144 = vmatpush1.bf16.msra.mxu0 0
    %145 = vmatprep.mubr.bf16.mxu0 0
    %146 = vmatmul.mubr.bf16.gmra.mrb[0].mxu0 %v92
    %v147 = vpop.f32.mrb[0].mxu0
    %v148 = vadd.f32 %v55, %v147
    %v149 = vpop.f32.mrb[0].mxu0
    %v150 = vadd.f32 %v59, %v149
    %v151 = vpop.f32.mrb[0].mxu0
    %v152 = vadd.f32 %v55, %v151
    %v153 = vpop.f32.mrb[0].mxu0
    %v154 = vadd.f32 %v59, %v153
    %155 = vmatprep.mubr.bf16.mxu0 0
    %156 = vmatmul.mubr.bf16.gmra.mrb[0].mxu0 %v95
    %v157 = vpop.f32.mrb[0].mxu0
    %v158 = vadd.f32 %v55, %v157
    %v159 = vpop.f32.mrb[0].mxu0
    %v160 = vadd.f32 %v59, %v159
    %v161 = vpop.f32.mrb[0].mxu0
    %v162 = vadd.f32 %v55, %v161
    %v163 = vpop.f32.mrb[0].mxu0
    %v164 = vadd.f32 %v59, %v163
    %165 = vmatprep.mubr.bf16.mxu0 0
    %166 = vmatmul.mubr.bf16.gmra.mrb[0].mxu0 %v98
    %v167 = vpop.f32.mrb[0].mxu0
    %v168 = vadd.f32 %v55, %v167
    %v169 = vpop.f32.mrb[0].mxu0
    %v170 = vadd.f32 %v59, %v169
    %v171 = vpop.f32.mrb[0].mxu0
    %v172 = vadd.f32 %v55, %v171
    %v173 = vpop.f32.mrb[0].mxu0
    %v174 = vadd.f32 %v59, %v173
    %175 = vmatprep.mubr.bf16.mxu0 0
    %176 = vmatmul.mubr.bf16.gmra.mrb[0].mxu0 %v101
    %v177 = vpop.f32.mrb[0].mxu0
    %v178 = vadd.f32 %v55, %v177
    %v179 = vpop.f32.mrb[0].mxu0
    %v180 = vadd.f32 %v59, %v179
    %v181 = vpop.f32.mrb[0].mxu0
    %v182 = vadd.f32 %v55, %v181
    %v183 = vpop.f32.mrb[0].mxu0
    %v184 = vadd.f32 %v59, %v183
    %185 = vdwg.mxu0
    %v194 = vunpack.c.l.b16 %v34
    %v195 = vunpack.c.h.b16 %v34
    %v196 = vunpack.c.l.b16 %v35
    %v197 = vunpack.c.h.b16 %v35
    %v198 = vunpack.c.l.b16 %v36
    %v199 = vunpack.c.h.b16 %v36
    %v200 = vunpack.c.l.b16 %v37
    %v201 = vunpack.c.h.b16 %v37
    %v202 = vunpack.c.l.b16 %v38
    %v203 = vunpack.c.h.b16 %v38
    %v204 = vunpack.c.l.b16 %v39
    %v205 = vunpack.c.h.b16 %v39
    %v206 = vunpack.c.l.b16 %v40
    %v207 = vunpack.c.h.b16 %v40
    %v208 = vunpack.c.l.b16 %v41
    %v209 = vunpack.c.h.b16 %v41
    %v210 = vpack.c.b16 %v196, %v194
    %v211 = vpack.c.b16 %v197, %v195
    %v212 = vpack.c.b16 %v200, %v198
    %v213 = vpack.c.b16 %v201, %v199
    %v214 = vpack.c.b16 %v204, %v202
    %v215 = vpack.c.b16 %v205, %v203
    %v216 = vpack.c.b16 %v208, %v206
    %v217 = vpack.c.b16 %v209, %v207
    %vm226 = vcmask 523264
    %v228 = vsel %vm226, 0, 0
    %230 = vmatprep.subr.bf16.mxu0 %v211
    %231 = vmatpush1.bf16.msra.mxu0 %v210
    %232 = vmatprep.subr.bf16.mxu0 %v213
    %233 = vmatpush1.bf16.msra.mxu0 %v212
    %234 = vmatprep.subr.bf16.mxu0 %v215
    %235 = vmatpush1.bf16.msra.mxu0 %v214
    %236 = vmatprep.subr.bf16.mxu0 %v217
    %237 = vmatpush1.bf16.msra.mxu0 %v216
    %238 = vmatprep.subr.bf16.mxu0 0
    %239 = vmatpush1.bf16.msra.mxu0 0
    %240 = vmatprep.subr.bf16.mxu0 0
    %241 = vmatpush1.bf16.msra.mxu0 0
    %242 = vmatprep.subr.bf16.mxu0 0
    %243 = vmatpush1.bf16.msra.mxu0 0
    %244 = vmatprep.subr.bf16.mxu0 0
    %245 = vmatpush1.bf16.msra.mxu0 0
    %246 = vmatprep.subr.bf16.mxu0 0
    %247 = vmatpush1.bf16.msra.mxu0 0
    %248 = vmatprep.subr.bf16.mxu0 0
    %249 = vmatpush1.bf16.msra.mxu0 0
    %250 = vmatprep.subr.bf16.mxu0 0
    %251 = vmatpush1.bf16.msra.mxu0 0
    %252 = vmatprep.subr.bf16.mxu0 0
    %253 = vmatpush1.bf16.msra.mxu0 0
    %254 = vmatprep.subr.bf16.mxu0 0
    %255 = vmatpush1.bf16.msra.mxu0 0
    %256 = vmatprep.subr.bf16.mxu0 0
    %257 = vmatpush1.bf16.msra.mxu0 0
    %258 = vmatprep.subr.bf16.mxu0 0
    %259 = vmatpush1.bf16.msra.mxu0 0
    %260 = vmatprep.subr.bf16.mxu0 0
    %261 = vmatpush1.bf16.msra.mxu0 0
    %262 = vmatprep.mubr.bf16.mxu0 0
    %263 = vmatmul.mubr.bf16.gmra.mrb[0].mxu0 %v228
    %v264 = vpop.f32.mrb[0].mxu0
    %v265 = vadd.f32 0.0, %v264
    %v266 = vpop.f32.mrb[0].mxu0
    %v267 = vadd.f32 0.0, %v266
    %v268 = vpop.f32.mrb[0].mxu0
    %v269 = vpop.f32.mrb[0].mxu0
    %270 = vdwg.mxu0
    %v271 = vadd.f32 %v148, %v265
    %v272 = vadd.f32 %v150, %v267
    %v273 = vxor.u32 %v271, 2147483648
    %v274 = vxor.u32 %v272, 2147483648
    %v275 = vmul.f32 %v273, 1.442695
    %v276 = vpow.pop %v275
    %v277 = vmul.f32 %v274, 1.442695
    %v278 = vpow.pop %v277
    %v279 = vadd.f32 %v276, 1.0
    %v280 = vadd.f32 %v278, 1.0
    %v281 = vrcp.pop %v279
    %v282 = vmul.f32 1.0, %v281
    %v283 = vrcp.pop %v280
    %v284 = vmul.f32 1.0, %v283
    %v285 = vtanh.pop %v272
    %v286 = vmul.f32 %v282, 0.0
    %v287 = vmul.f32 %v282, %v285
    %289 = vrot.lane.b32.xlu0 %v287, 64
    %v290 = vpop.permute.xlu0 %289
    %v292 = vadd.f32 %v286, %v290
    %v293 = vtanh.pop %v292
    %v294 = vmul.f32 %v284, %v293
    %v295 = vpack.c.bf16 %v294, %v294
    %297 = vrot.lane.b32.xlu0 %v295, 64
    %v298 = vpop.permute.xlu0 %297
    %v300 = vsel %vm226, %v298, 0
    %302 = vmatprep.subr.bf16.mxu0 %v211
    %303 = vmatpush1.bf16.msra.mxu0 %v210
    %304 = vmatprep.subr.bf16.mxu0 %v213
    %305 = vmatpush1.bf16.msra.mxu0 %v212
    %306 = vmatprep.subr.bf16.mxu0 %v215
    %307 = vmatpush1.bf16.msra.mxu0 %v214
    %308 = vmatprep.subr.bf16.mxu0 %v217
    %309 = vmatpush1.bf16.msra.mxu0 %v216
    %310 = vmatprep.subr.bf16.mxu0 0
    %311 = vmatpush1.bf16.msra.mxu0 0
    %312 = vmatprep.subr.bf16.mxu0 0
    %313 = vmatpush1.bf16.msra.mxu0 0
    %314 = vmatprep.subr.bf16.mxu0 0
    %315 = vmatpush1.bf16.msra.mxu0 0
    %316 = vmatprep.subr.bf16.mxu0 0
    %317 = vmatpush1.bf16.msra.mxu0 0
    %318 = vmatprep.subr.bf16.mxu0 0
    %319 = vmatpush1.bf16.msra.mxu0 0
    %320 = vmatprep.subr.bf16.mxu0 0
    %321 = vmatpush1.bf16.msra.mxu0 0
    %322 = vmatprep.subr.bf16.mxu0 0
    %323 = vmatpush1.bf16.msra.mxu0 0
    %324 = vmatprep.subr.bf16.mxu0 0
    %325 = vmatpush1.bf16.msra.mxu0 0
    %326 = vmatprep.subr.bf16.mxu0 0
    %327 = vmatpush1.bf16.msra.mxu0 0
    %328 = vmatprep.subr.bf16.mxu0 0
    %329 = vmatpush1.bf16.msra.mxu0 0
    %330 = vmatprep.subr.bf16.mxu0 0
    %331 = vmatpush1.bf16.msra.mxu0 0
    %332 = vmatprep.subr.bf16.mxu0 0
    %333 = vmatpush1.bf16.msra.mxu0 0
    %334 = vmatprep.mubr.bf16.mxu0 0
    %335 = vmatmul.mubr.bf16.gmra.mrb[0].mxu0 %v300
    %v336 = vpop.f32.mrb[0].mxu0
    %v337 = vadd.f32 0.0, %v336
    %v338 = vpop.f32.mrb[0].mxu0
    %v339 = vadd.f32 0.0, %v338
    %v340 = vpop.f32.mrb[0].mxu0
    %v341 = vpop.f32.mrb[0].mxu0
    %342 = vdwg.mxu0
    %v343 = vadd.f32 %v152, %v337
    %v344 = vadd.f32 %v154, %v339
    %v345 = vxor.u32 %v343, 2147483648
    %v346 = vxor.u32 %v344, 2147483648
    %v347 = vmul.f32 %v345, 1.442695
    %v348 = vpow.pop %v347
    %v349 = vmul.f32 %v346, 1.442695
    %v350 = vpow.pop %v349
    %v351 = vadd.f32 %v348, 1.0
    %v352 = vadd.f32 %v350, 1.0
    %v353 = vrcp.pop %v351
    %v354 = vmul.f32 1.0, %v353
    %v355 = vrcp.pop %v352
    %v356 = vmul.f32 1.0, %v355
    %v357 = vtanh.pop %v344
    %v358 = vmul.f32 %v354, %v292
    %v359 = vmul.f32 %v354, %v357
    %361 = vrot.lane.b32.xlu0 %v359, 64
    %v362 = vpop.permute.xlu0 %361
    %v364 = vadd.f32 %v358, %v362
    %v365 = vtanh.pop %v364
    %v366 = vmul.f32 %v356, %v365
    %v367 = vpack.c.bf16 %v366, %v366
    %369 = vrot.lane.b32.xlu0 %v367, 64
    %v370 = vpop.permute.xlu0 %369
    %v372 = vsel %vm226, %v370, 0
    %374 = vmatprep.subr.bf16.mxu0 %v211
    %375 = vmatpush1.bf16.msra.mxu0 %v210
    %376 = vmatprep.subr.bf16.mxu0 %v213
    %377 = vmatpush1.bf16.msra.mxu0 %v212
    %378 = vmatprep.subr.bf16.mxu0 %v215
    %379 = vmatpush1.bf16.msra.mxu0 %v214
    %380 = vmatprep.subr.bf16.mxu0 %v217
    %381 = vmatpush1.bf16.msra.mxu0 %v216
    %382 = vmatprep.subr.bf16.mxu0 0
    %383 = vmatpush1.bf16.msra.mxu0 0
    %384 = vmatprep.subr.bf16.mxu0 0
    %385 = vmatpush1.bf16.msra.mxu0 0
    %386 = vmatprep.subr.bf16.mxu0 0
    %387 = vmatpush1.bf16.msra.mxu0 0
    %388 = vmatprep.subr.bf16.mxu0 0
    %389 = vmatpush1.bf16.msra.mxu0 0
    %390 = vmatprep.subr.bf16.mxu0 0
    %391 = vmatpush1.bf16.msra.mxu0 0
    %392 = vmatprep.subr.bf16.mxu0 0
    %393 = vmatpush1.bf16.msra.mxu0 0
    %394 = vmatprep.subr.bf16.mxu0 0
    %395 = vmatpush1.bf16.msra.mxu0 0
    %396 = vmatprep.subr.bf16.mxu0 0
    %397 = vmatpush1.bf16.msra.mxu0 0
    %398 = vmatprep.subr.bf16.mxu0 0
    %399 = vmatpush1.bf16.msra.mxu0 0
    %400 = vmatprep.subr.bf16.mxu0 0
    %401 = vmatpush1.bf16.msra.mxu0 0
    %402 = vmatprep.subr.bf16.mxu0 0
    %403 = vmatpush1.bf16.msra.mxu0 0
    %404 = vmatprep.subr.bf16.mxu0 0
    %405 = vmatpush1.bf16.msra.mxu0 0
    %406 = vmatprep.mubr.bf16.mxu0 0
    %407 = vmatmul.mubr.bf16.gmra.mrb[0].mxu0 %v372
    %v408 = vpop.f32.mrb[0].mxu0
    %v409 = vadd.f32 0.0, %v408
    %v410 = vpop.f32.mrb[0].mxu0
    %v411 = vadd.f32 0.0, %v410
    %v412 = vpop.f32.mrb[0].mxu0
    %v413 = vpop.f32.mrb[0].mxu0
    %414 = vdwg.mxu0
    %v415 = vadd.f32 %v158, %v409
    %v416 = vadd.f32 %v160, %v411
    %v417 = vxor.u32 %v415, 2147483648
    %v418 = vxor.u32 %v416, 2147483648
    %v419 = vmul.f32 %v417, 1.442695
    %v420 = vpow.pop %v419
    %v421 = vmul.f32 %v418, 1.442695
    %v422 = vpow.pop %v421
    %v423 = vadd.f32 %v420, 1.0
    %v424 = vadd.f32 %v422, 1.0
    %v425 = vrcp.pop %v423
    %v426 = vmul.f32 1.0, %v425
    %v427 = vrcp.pop %v424
    %v428 = vmul.f32 1.0, %v427
    %v429 = vtanh.pop %v416
    %v430 = vmul.f32 %v426, %v364
    %v431 = vmul.f32 %v426, %v429
    %433 = vrot.lane.b32.xlu0 %v431, 64
    %v434 = vpop.permute.xlu0 %433
    %v436 = vadd.f32 %v430, %v434
    %v437 = vtanh.pop %v436
    %v438 = vmul.f32 %v428, %v437
    %v439 = vpack.c.bf16 %v438, %v438
    %441 = vrot.lane.b32.xlu0 %v439, 64
    %v442 = vpop.permute.xlu0 %441
    %v444 = vsel %vm226, %v442, 0
    %446 = vmatprep.subr.bf16.mxu0 %v211
    %447 = vmatpush1.bf16.msra.mxu0 %v210
    %448 = vmatprep.subr.bf16.mxu0 %v213
    %449 = vmatpush1.bf16.msra.mxu0 %v212
    %450 = vmatprep.subr.bf16.mxu0 %v215
    %451 = vmatpush1.bf16.msra.mxu0 %v214
    %452 = vmatprep.subr.bf16.mxu0 %v217
    %453 = vmatpush1.bf16.msra.mxu0 %v216
    %454 = vmatprep.subr.bf16.mxu0 0
    %455 = vmatpush1.bf16.msra.mxu0 0
    %456 = vmatprep.subr.bf16.mxu0 0
    %457 = vmatpush1.bf16.msra.mxu0 0
    %458 = vmatprep.subr.bf16.mxu0 0
    %459 = vmatpush1.bf16.msra.mxu0 0
    %460 = vmatprep.subr.bf16.mxu0 0
    %461 = vmatpush1.bf16.msra.mxu0 0
    %462 = vmatprep.subr.bf16.mxu0 0
    %463 = vmatpush1.bf16.msra.mxu0 0
    %464 = vmatprep.subr.bf16.mxu0 0
    %465 = vmatpush1.bf16.msra.mxu0 0
    %466 = vmatprep.subr.bf16.mxu0 0
    %467 = vmatpush1.bf16.msra.mxu0 0
    %468 = vmatprep.subr.bf16.mxu0 0
    %469 = vmatpush1.bf16.msra.mxu0 0
    %470 = vmatprep.subr.bf16.mxu0 0
    %471 = vmatpush1.bf16.msra.mxu0 0
    %472 = vmatprep.subr.bf16.mxu0 0
    %473 = vmatpush1.bf16.msra.mxu0 0
    %474 = vmatprep.subr.bf16.mxu0 0
    %475 = vmatpush1.bf16.msra.mxu0 0
    %476 = vmatprep.subr.bf16.mxu0 0
    %477 = vmatpush1.bf16.msra.mxu0 0
    %478 = vmatprep.mubr.bf16.mxu0 0
    %479 = vmatmul.mubr.bf16.gmra.mrb[0].mxu0 %v444
    %v480 = vpop.f32.mrb[0].mxu0
    %v481 = vadd.f32 0.0, %v480
    %v482 = vpop.f32.mrb[0].mxu0
    %v483 = vadd.f32 0.0, %v482
    %v484 = vpop.f32.mrb[0].mxu0
    %v485 = vpop.f32.mrb[0].mxu0
    %486 = vdwg.mxu0
    %v487 = vadd.f32 %v162, %v481
    %v488 = vadd.f32 %v164, %v483
    %v489 = vxor.u32 %v487, 2147483648
    %v490 = vxor.u32 %v488, 2147483648
    %v491 = vmul.f32 %v489, 1.442695
    %v492 = vpow.pop %v491
    %v493 = vmul.f32 %v490, 1.442695
    %v494 = vpow.pop %v493
    %v495 = vadd.f32 %v492, 1.0
    %v496 = vadd.f32 %v494, 1.0
    %v497 = vrcp.pop %v495
    %v498 = vmul.f32 1.0, %v497
    %v499 = vrcp.pop %v496
    %v500 = vmul.f32 1.0, %v499
    %v501 = vtanh.pop %v488
    %v502 = vmul.f32 %v498, %v436
    %v503 = vmul.f32 %v498, %v501
    %505 = vrot.lane.b32.xlu0 %v503, 64
    %v506 = vpop.permute.xlu0 %505
    %v508 = vadd.f32 %v502, %v506
    %v509 = vtanh.pop %v508
    %v510 = vmul.f32 %v500, %v509
    %v511 = vpack.c.bf16 %v510, %v510
    %513 = vrot.lane.b32.xlu0 %v511, 64
    %v514 = vpop.permute.xlu0 %513
    %v516 = vsel %vm226, %v514, 0
    %518 = vmatprep.subr.bf16.mxu0 %v211
    %519 = vmatpush1.bf16.msra.mxu0 %v210
    %520 = vmatprep.subr.bf16.mxu0 %v213
    %521 = vmatpush1.bf16.msra.mxu0 %v212
    %522 = vmatprep.subr.bf16.mxu0 %v215
    %523 = vmatpush1.bf16.msra.mxu0 %v214
    %524 = vmatprep.subr.bf16.mxu0 %v217
    %525 = vmatpush1.bf16.msra.mxu0 %v216
    %526 = vmatprep.subr.bf16.mxu0 0
    %527 = vmatpush1.bf16.msra.mxu0 0
    %528 = vmatprep.subr.bf16.mxu0 0
    %529 = vmatpush1.bf16.msra.mxu0 0
    %530 = vmatprep.subr.bf16.mxu0 0
    %531 = vmatpush1.bf16.msra.mxu0 0
    %532 = vmatprep.subr.bf16.mxu0 0
    %533 = vmatpush1.bf16.msra.mxu0 0
    %534 = vmatprep.subr.bf16.mxu0 0
    %535 = vmatpush1.bf16.msra.mxu0 0
    %536 = vmatprep.subr.bf16.mxu0 0
    %537 = vmatpush1.bf16.msra.mxu0 0
    %538 = vmatprep.subr.bf16.mxu0 0
    %539 = vmatpush1.bf16.msra.mxu0 0
    %540 = vmatprep.subr.bf16.mxu0 0
    %541 = vmatpush1.bf16.msra.mxu0 0
    %542 = vmatprep.subr.bf16.mxu0 0
    %543 = vmatpush1.bf16.msra.mxu0 0
    %544 = vmatprep.subr.bf16.mxu0 0
    %545 = vmatpush1.bf16.msra.mxu0 0
    %546 = vmatprep.subr.bf16.mxu0 0
    %547 = vmatpush1.bf16.msra.mxu0 0
    %548 = vmatprep.subr.bf16.mxu0 0
    %549 = vmatpush1.bf16.msra.mxu0 0
    %550 = vmatprep.mubr.bf16.mxu0 0
    %551 = vmatmul.mubr.bf16.gmra.mrb[0].mxu0 %v516
    %v552 = vpop.f32.mrb[0].mxu0
    %v553 = vadd.f32 0.0, %v552
    %v554 = vpop.f32.mrb[0].mxu0
    %v555 = vadd.f32 0.0, %v554
    %v556 = vpop.f32.mrb[0].mxu0
    %v557 = vpop.f32.mrb[0].mxu0
    %558 = vdwg.mxu0
    %v559 = vadd.f32 %v168, %v553
    %v560 = vadd.f32 %v170, %v555
    %v561 = vxor.u32 %v559, 2147483648
    %v562 = vxor.u32 %v560, 2147483648
    %v563 = vmul.f32 %v561, 1.442695
    %v564 = vpow.pop %v563
    %v565 = vmul.f32 %v562, 1.442695
    %v566 = vpow.pop %v565
    %v567 = vadd.f32 %v564, 1.0
    %v568 = vadd.f32 %v566, 1.0
    %v569 = vrcp.pop %v567
    %v570 = vmul.f32 1.0, %v569
    %v571 = vrcp.pop %v568
    %v572 = vmul.f32 1.0, %v571
    %v573 = vtanh.pop %v560
    %v574 = vmul.f32 %v570, %v508
    %v575 = vmul.f32 %v570, %v573
    %577 = vrot.lane.b32.xlu0 %v575, 64
    %v578 = vpop.permute.xlu0 %577
    %v580 = vadd.f32 %v574, %v578
    %v581 = vtanh.pop %v580
    %v582 = vmul.f32 %v572, %v581
    %v583 = vpack.c.bf16 %v582, %v582
    %585 = vrot.lane.b32.xlu0 %v583, 64
    %v586 = vpop.permute.xlu0 %585
    %v588 = vsel %vm226, %v586, 0
    %590 = vmatprep.subr.bf16.mxu0 %v211
    %591 = vmatpush1.bf16.msra.mxu0 %v210
    %592 = vmatprep.subr.bf16.mxu0 %v213
    %593 = vmatpush1.bf16.msra.mxu0 %v212
    %594 = vmatprep.subr.bf16.mxu0 %v215
    %595 = vmatpush1.bf16.msra.mxu0 %v214
    %596 = vmatprep.subr.bf16.mxu0 %v217
    %597 = vmatpush1.bf16.msra.mxu0 %v216
    %598 = vmatprep.subr.bf16.mxu0 0
    %599 = vmatpush1.bf16.msra.mxu0 0
    %600 = vmatprep.subr.bf16.mxu0 0
    %601 = vmatpush1.bf16.msra.mxu0 0
    %602 = vmatprep.subr.bf16.mxu0 0
    %603 = vmatpush1.bf16.msra.mxu0 0
    %604 = vmatprep.subr.bf16.mxu0 0
    %605 = vmatpush1.bf16.msra.mxu0 0
    %606 = vmatprep.subr.bf16.mxu0 0
    %607 = vmatpush1.bf16.msra.mxu0 0
    %608 = vmatprep.subr.bf16.mxu0 0
    %609 = vmatpush1.bf16.msra.mxu0 0
    %610 = vmatprep.subr.bf16.mxu0 0
    %611 = vmatpush1.bf16.msra.mxu0 0
    %612 = vmatprep.subr.bf16.mxu0 0
    %613 = vmatpush1.bf16.msra.mxu0 0
    %614 = vmatprep.subr.bf16.mxu0 0
    %615 = vmatpush1.bf16.msra.mxu0 0
    %616 = vmatprep.subr.bf16.mxu0 0
    %617 = vmatpush1.bf16.msra.mxu0 0
    %618 = vmatprep.subr.bf16.mxu0 0
    %619 = vmatpush1.bf16.msra.mxu0 0
    %620 = vmatprep.subr.bf16.mxu0 0
    %621 = vmatpush1.bf16.msra.mxu0 0
    %622 = vmatprep.mubr.bf16.mxu0 0
    %623 = vmatmul.mubr.bf16.gmra.mrb[0].mxu0 %v588
    %v624 = vpop.f32.mrb[0].mxu0
    %v625 = vadd.f32 0.0, %v624
    %v626 = vpop.f32.mrb[0].mxu0
    %v627 = vadd.f32 0.0, %v626
    %v628 = vpop.f32.mrb[0].mxu0
    %v629 = vpop.f32.mrb[0].mxu0
    %630 = vdwg.mxu0
    %v631 = vadd.f32 %v172, %v625
    %v632 = vadd.f32 %v174, %v627
    %v633 = vxor.u32 %v631, 2147483648
    %v634 = vxor.u32 %v632, 2147483648
    %v635 = vmul.f32 %v633, 1.442695
    %v636 = vpow.pop %v635
    %v637 = vmul.f32 %v634, 1.442695
    %v638 = vpow.pop %v637
    %v639 = vadd.f32 %v636, 1.0
    %v640 = vadd.f32 %v638, 1.0
    %v641 = vrcp.pop %v639
    %v642 = vmul.f32 1.0, %v641
    %v643 = vrcp.pop %v640
    %v644 = vmul.f32 1.0, %v643
    %v645 = vtanh.pop %v632
    %v646 = vmul.f32 %v642, %v580
    %v647 = vmul.f32 %v642, %v645
    %649 = vrot.lane.b32.xlu0 %v647, 64
    %v650 = vpop.permute.xlu0 %649
    %v652 = vadd.f32 %v646, %v650
    %v653 = vtanh.pop %v652
    %v654 = vmul.f32 %v644, %v653
    %v655 = vpack.c.bf16 %v654, %v654
    %657 = vrot.lane.b32.xlu0 %v655, 64
    %v658 = vpop.permute.xlu0 %657
    %v660 = vsel %vm226, %v658, 0
    %662 = vmatprep.subr.bf16.mxu0 %v211
    %663 = vmatpush1.bf16.msra.mxu0 %v210
    %664 = vmatprep.subr.bf16.mxu0 %v213
    %665 = vmatpush1.bf16.msra.mxu0 %v212
    %666 = vmatprep.subr.bf16.mxu0 %v215
    %667 = vmatpush1.bf16.msra.mxu0 %v214
    %668 = vmatprep.subr.bf16.mxu0 %v217
    %669 = vmatpush1.bf16.msra.mxu0 %v216
    %670 = vmatprep.subr.bf16.mxu0 0
    %671 = vmatpush1.bf16.msra.mxu0 0
    %672 = vmatprep.subr.bf16.mxu0 0
    %673 = vmatpush1.bf16.msra.mxu0 0
    %674 = vmatprep.subr.bf16.mxu0 0
    %675 = vmatpush1.bf16.msra.mxu0 0
    %676 = vmatprep.subr.bf16.mxu0 0
    %677 = vmatpush1.bf16.msra.mxu0 0
    %678 = vmatprep.subr.bf16.mxu0 0
    %679 = vmatpush1.bf16.msra.mxu0 0
    %680 = vmatprep.subr.bf16.mxu0 0
    %681 = vmatpush1.bf16.msra.mxu0 0
    %682 = vmatprep.subr.bf16.mxu0 0
    %683 = vmatpush1.bf16.msra.mxu0 0
    %684 = vmatprep.subr.bf16.mxu0 0
    %685 = vmatpush1.bf16.msra.mxu0 0
    %686 = vmatprep.subr.bf16.mxu0 0
    %687 = vmatpush1.bf16.msra.mxu0 0
    %688 = vmatprep.subr.bf16.mxu0 0
    %689 = vmatpush1.bf16.msra.mxu0 0
    %690 = vmatprep.subr.bf16.mxu0 0
    %691 = vmatpush1.bf16.msra.mxu0 0
    %692 = vmatprep.subr.bf16.mxu0 0
    %693 = vmatpush1.bf16.msra.mxu0 0
    %694 = vmatprep.mubr.bf16.mxu0 0
    %695 = vmatmul.mubr.bf16.gmra.mrb[0].mxu0 %v660
    %v696 = vpop.f32.mrb[0].mxu0
    %v697 = vadd.f32 0.0, %v696
    %v698 = vpop.f32.mrb[0].mxu0
    %v699 = vadd.f32 0.0, %v698
    %v700 = vpop.f32.mrb[0].mxu0
    %v701 = vpop.f32.mrb[0].mxu0
    %702 = vdwg.mxu0
    %v703 = vadd.f32 %v178, %v697
    %v704 = vadd.f32 %v180, %v699
    %v705 = vxor.u32 %v703, 2147483648
    %v706 = vxor.u32 %v704, 2147483648
    %v707 = vmul.f32 %v705, 1.442695
    %v708 = vpow.pop %v707
    %v709 = vmul.f32 %v706, 1.442695
    %v710 = vpow.pop %v709
    %v711 = vadd.f32 %v708, 1.0
    %v712 = vadd.f32 %v710, 1.0
    %v713 = vrcp.pop %v711
    %v714 = vmul.f32 1.0, %v713
    %v715 = vrcp.pop %v712
    %v716 = vmul.f32 1.0, %v715
    %v717 = vtanh.pop %v704
    %v718 = vmul.f32 %v714, %v652
    %v719 = vmul.f32 %v714, %v717
    %721 = vrot.lane.b32.xlu0 %v719, 64
    %v722 = vpop.permute.xlu0 %721
    %v724 = vadd.f32 %v718, %v722
    %v725 = vtanh.pop %v724
    %v726 = vmul.f32 %v716, %v725
    %v727 = vpack.c.bf16 %v726, %v726
    %729 = vrot.lane.b32.xlu0 %v727, 64
    %v730 = vpop.permute.xlu0 %729
    %v732 = vsel %vm226, %v730, 0
    %734 = vmatprep.subr.bf16.mxu0 %v211
    %735 = vmatpush1.bf16.msra.mxu0 %v210
    %736 = vmatprep.subr.bf16.mxu0 %v213
    %737 = vmatpush1.bf16.msra.mxu0 %v212
    %738 = vmatprep.subr.bf16.mxu0 %v215
    %739 = vmatpush1.bf16.msra.mxu0 %v214
    %740 = vmatprep.subr.bf16.mxu0 %v217
    %741 = vmatpush1.bf16.msra.mxu0 %v216
    %742 = vmatprep.subr.bf16.mxu0 0
    %743 = vmatpush1.bf16.msra.mxu0 0
    %744 = vmatprep.subr.bf16.mxu0 0
    %745 = vmatpush1.bf16.msra.mxu0 0
    %746 = vmatprep.subr.bf16.mxu0 0
    %747 = vmatpush1.bf16.msra.mxu0 0
    %748 = vmatprep.subr.bf16.mxu0 0
    %749 = vmatpush1.bf16.msra.mxu0 0
    %750 = vmatprep.subr.bf16.mxu0 0
    %751 = vmatpush1.bf16.msra.mxu0 0
    %752 = vmatprep.subr.bf16.mxu0 0
    %753 = vmatpush1.bf16.msra.mxu0 0
    %754 = vmatprep.subr.bf16.mxu0 0
    %755 = vmatpush1.bf16.msra.mxu0 0
    %756 = vmatprep.subr.bf16.mxu0 0
    %757 = vmatpush1.bf16.msra.mxu0 0
    %758 = vmatprep.subr.bf16.mxu0 0
    %759 = vmatpush1.bf16.msra.mxu0 0
    %760 = vmatprep.subr.bf16.mxu0 0
    %761 = vmatpush1.bf16.msra.mxu0 0
    %762 = vmatprep.subr.bf16.mxu0 0
    %763 = vmatpush1.bf16.msra.mxu0 0
    %764 = vmatprep.subr.bf16.mxu0 0
    %765 = vmatpush1.bf16.msra.mxu0 0
    %766 = vmatprep.mubr.bf16.mxu0 0
    %767 = vmatmul.mubr.bf16.gmra.mrb[0].mxu0 %v732
    %v768 = vpop.f32.mrb[0].mxu0
    %v769 = vadd.f32 0.0, %v768
    %v770 = vpop.f32.mrb[0].mxu0
    %v771 = vadd.f32 0.0, %v770
    %v772 = vpop.f32.mrb[0].mxu0
    %v773 = vpop.f32.mrb[0].mxu0
    %774 = vdwg.mxu0
    %v775 = vadd.f32 %v182, %v769
    %v776 = vadd.f32 %v184, %v771
    %v777 = vxor.u32 %v775, 2147483648
    %v778 = vxor.u32 %v776, 2147483648
    %v779 = vmul.f32 %v777, 1.442695
    %v780 = vpow.pop %v779
    %v781 = vmul.f32 %v778, 1.442695
    %v782 = vpow.pop %v781
    %v783 = vadd.f32 %v780, 1.0
    %v784 = vadd.f32 %v782, 1.0
    %v785 = vrcp.pop %v783
    %v786 = vmul.f32 1.0, %v785
    %v787 = vrcp.pop %v784
    %v788 = vmul.f32 1.0, %v787
    %v789 = vtanh.pop %v776
    %v790 = vmul.f32 %v786, %v724
    %v791 = vmul.f32 %v786, %v789
    %793 = vrot.lane.b32.xlu0 %v791, 64
    %v794 = vpop.permute.xlu0 %793
    %v796 = vadd.f32 %v790, %v794
    %v797 = vtanh.pop %v796
    %v798 = vmul.f32 %v788, %v797
    %v799 = vld [vmem:[#allocation2] sm:$0xff]
    %v800 = vld [vmem:[#allocation2 + $0x8] sm:$0xff]
    %v801 = vld [vmem:[#allocation2 + $0x10] sm:$0xff]
    %v802 = vld [vmem:[#allocation2 + $0x18] sm:$0xff]
    %v803 = vld [vmem:[#allocation2 + $0x20] sm:$0xff]
    %v804 = vld [vmem:[#allocation2 + $0x28] sm:$0xff]
    %v805 = vld [vmem:[#allocation2 + $0x30] sm:$0xff]
    %v806 = vld [vmem:[#allocation2 + $0x38] sm:$0xff]
    %v807 = vld [vmem:[#allocation2 + $0x40] sm:$0x1]
    %v808 = vld [vmem:[#allocation2 + $0x48] sm:$0xff]
    %v809 = vld [vmem:[#allocation2 + $0x50] sm:$0xff]
    %v810 = vld [vmem:[#allocation2 + $0x58] sm:$0xff]
    %v811 = vld [vmem:[#allocation2 + $0x60] sm:$0xff]
    %v812 = vld [vmem:[#allocation2 + $0x68] sm:$0xff]
    %v813 = vld [vmem:[#allocation2 + $0x70] sm:$0xff]
    %v814 = vld [vmem:[#allocation2 + $0x78] sm:$0xff]
    %v815 = vld [vmem:[#allocation2 + $0x80] sm:$0xff]
    %v816 = vld [vmem:[#allocation2 + $0x88] sm:$0xff]
    %v817 = vld [vmem:[#allocation2 + $0x90] sm:$0xff]
    %v818 = vld [vmem:[#allocation2 + $0x98] sm:$0xff]
    %v819 = vld [vmem:[#allocation2 + $0xa0] sm:$0xff]
    %v820 = vld [vmem:[#allocation2 + $0xa8] sm:$0xff]
    %v821 = vld [vmem:[#allocation2 + $0xb0] sm:$0xff]
    %v822 = vld [vmem:[#allocation2 + $0xb8] sm:$0xff]
    %v823 = vld [vmem:[#allocation2 + $0xc0] sm:$0xff]
    %v824 = vld [vmem:[#allocation2 + $0xc8] sm:$0x1]
    %v825 = vlaneseq
    %v826 = vshrl.u32 %v825, 7
    %v827 = vsub.s32 0, %v826
    %v828 = vrot.slane %v807, %v827
    %830 = vrot.lane.b32.xlu0 %v798, 64
    %v831 = vpop.permute.xlu0 %830
    %v832 = vsel %vm226, %v831, 0
    %834 = vmatprep.subr.mxu0 0.0
    %835 = vmatpush1.msra.mxu0 %v799
    %836 = vmatprep.subr.mxu0 0.0
    %837 = vmatpush1.msra.mxu0 %v800
    %838 = vmatprep.subr.mxu0 0.0
    %839 = vmatpush1.msra.mxu0 %v801
    %840 = vmatprep.subr.mxu0 0.0
    %841 = vmatpush1.msra.mxu0 %v802
    %842 = vmatprep.subr.mxu0 0.0
    %843 = vmatpush1.msra.mxu0 %v803
    %844 = vmatprep.subr.mxu0 0.0
    %845 = vmatpush1.msra.mxu0 %v804
    %846 = vmatprep.subr.mxu0 0.0
    %847 = vmatpush1.msra.mxu0 %v805
    %848 = vmatprep.subr.mxu0 0.0
    %849 = vmatpush1.msra.mxu0 %v806
    %850 = vmatprep.subr.mxu0 0.0
    %851 = vmatpush1.msra.mxu0 0.0
    %852 = vmatprep.subr.mxu0 0.0
    %853 = vmatpush1.msra.mxu0 0.0
    %854 = vmatprep.subr.mxu0 0.0
    %855 = vmatpush1.msra.mxu0 0.0
    %856 = vmatprep.subr.mxu0 0.0
    %857 = vmatpush1.msra.mxu0 0.0
    %858 = vmatprep.subr.mxu0 0.0
    %859 = vmatpush1.msra.mxu0 0.0
    %860 = vmatprep.subr.mxu0 0.0
    %861 = vmatpush1.msra.mxu0 0.0
    %862 = vmatprep.subr.mxu0 0.0
    %863 = vmatpush1.msra.mxu0 0.0
    %864 = vmatprep.subr.mxu0 0.0
    %865 = vmatpush1.msra.mxu0 0.0
    %866 = vmatprep.subr.mxu0 0.0
    %867 = vmatpush1.msra.mxu0 0.0
    %868 = vmatprep.subr.mxu0 0.0
    %869 = vmatpush1.msra.mxu0 0.0
    %870 = vmatprep.subr.mxu0 0.0
    %871 = vmatpush1.msra.mxu0 0.0
    %872 = vmatprep.subr.mxu0 0.0
    %873 = vmatpush1.msra.mxu0 0.0
    %874 = vmatprep.subr.mxu0 0.0
    %875 = vmatpush1.msra.mxu0 0.0
    %876 = vmatprep.subr.mxu0 0.0
    %877 = vmatpush1.msra.mxu0 0.0
    %878 = vmatprep.subr.mxu0 0.0
    %879 = vmatpush1.msra.mxu0 0.0
    %880 = vmatprep.subr.mxu0 0.0
    %881 = vmatpush1.msra.mxu0 0.0
    %882 = vmatprep.subr.mxu0 0.0
    %883 = vmatpush1.msra.mxu0 0.0
    %884 = vmatprep.subr.mxu0 0.0
    %885 = vmatpush1.msra.mxu0 0.0
    %886 = vmatprep.subr.mxu0 0.0
    %887 = vmatpush1.msra.mxu0 0.0
    %888 = vmatprep.subr.mxu0 0.0
    %889 = vmatpush1.msra.mxu0 0.0
    %890 = vmatprep.subr.mxu0 0.0
    %891 = vmatpush1.msra.mxu0 0.0
    %892 = vmatprep.subr.mxu0 0.0
    %893 = vmatpush1.msra.mxu0 0.0
    %894 = vmatprep.subr.mxu0 0.0
    %895 = vmatpush1.msra.mxu0 0.0
    %896 = vmatprep.subr.mxu0 0.0
    %897 = vmatpush1.msra.mxu0 0.0
    %898 = vmatprep.mubr.f32.mxu0 0.0
    %899 = vmatmul.mubr.f32.gmra.mrb[0].mxu0 %v832
    %v900 = vpop.f32.mrb[0].mxu0
    %v901 = vadd.f32 %v828, %v900
    %v902 = vpop.f32.mrb[0].mxu0
    %903 = vdwg.mxu0
    %v904 = vmax.f32 %v901, 0.0
    %v905 = vlaneseq
    %v906 = vshrl.u32 %v905, 7
    %v907 = vsub.s32 0, %v906
    %v908 = vrot.slane %v824, %v907
    %909 = vmatprep.subr.mxu0 0.0
    %910 = vmatpush1.msra.mxu0 %v808
    %911 = vmatprep.subr.mxu0 0.0
    %912 = vmatpush1.msra.mxu0 %v809
    %913 = vmatprep.subr.mxu0 0.0
    %914 = vmatpush1.msra.mxu0 %v810
    %915 = vmatprep.subr.mxu0 0.0
    %916 = vmatpush1.msra.mxu0 %v811
    %917 = vmatprep.subr.mxu0 0.0
    %918 = vmatpush1.msra.mxu0 %v812
    %919 = vmatprep.subr.mxu0 0.0
    %920 = vmatpush1.msra.mxu0 %v813
    %921 = vmatprep.subr.mxu0 0.0
    %922 = vmatpush1.msra.mxu0 %v814
    %923 = vmatprep.subr.mxu0 0.0
    %924 = vmatpush1.msra.mxu0 %v815
    %925 = vmatprep.subr.mxu0 0.0
    %926 = vmatpush1.msra.mxu0 %v816
    %927 = vmatprep.subr.mxu0 0.0
    %928 = vmatpush1.msra.mxu0 %v817
    %929 = vmatprep.subr.mxu0 0.0
    %930 = vmatpush1.msra.mxu0 %v818
    %931 = vmatprep.subr.mxu0 0.0
    %932 = vmatpush1.msra.mxu0 %v819
    %933 = vmatprep.subr.mxu0 0.0
    %934 = vmatpush1.msra.mxu0 %v820
    %935 = vmatprep.subr.mxu0 0.0
    %936 = vmatpush1.msra.mxu0 %v821
    %937 = vmatprep.subr.mxu0 0.0
    %938 = vmatpush1.msra.mxu0 %v822
    %939 = vmatprep.subr.mxu0 0.0
    %940 = vmatpush1.msra.mxu0 %v823
    %941 = vmatprep.subr.mxu0 0.0
    %942 = vmatpush1.msra.mxu0 0.0
    %943 = vmatprep.subr.mxu0 0.0
    %944 = vmatpush1.msra.mxu0 0.0
    %945 = vmatprep.subr.mxu0 0.0
    %946 = vmatpush1.msra.mxu0 0.0
    %947 = vmatprep.subr.mxu0 0.0
    %948 = vmatpush1.msra.mxu0 0.0
    %949 = vmatprep.subr.mxu0 0.0
    %950 = vmatpush1.msra.mxu0 0.0
    %951 = vmatprep.subr.mxu0 0.0
    %952 = vmatpush1.msra.mxu0 0.0
    %953 = vmatprep.subr.mxu0 0.0
    %954 = vmatpush1.msra.mxu0 0.0
    %955 = vmatprep.subr.mxu0 0.0
    %956 = vmatpush1.msra.mxu0 0.0
    %957 = vmatprep.subr.mxu0 0.0
    %958 = vmatpush1.msra.mxu0 0.0
    %959 = vmatprep.subr.mxu0 0.0
    %960 = vmatpush1.msra.mxu0 0.0
    %961 = vmatprep.subr.mxu0 0.0
    %962 = vmatpush1.msra.mxu0 0.0
    %963 = vmatprep.subr.mxu0 0.0
    %964 = vmatpush1.msra.mxu0 0.0
    %965 = vmatprep.subr.mxu0 0.0
    %966 = vmatpush1.msra.mxu0 0.0
    %967 = vmatprep.subr.mxu0 0.0
    %968 = vmatpush1.msra.mxu0 0.0
    %969 = vmatprep.subr.mxu0 0.0
    %970 = vmatpush1.msra.mxu0 0.0
    %971 = vmatprep.subr.mxu0 0.0
    %972 = vmatpush1.msra.mxu0 0.0
    %973 = vmatprep.mubr.f32.mxu0 0.0
    %974 = vmatmul.mubr.f32.gmra.mrb[0].mxu0 %v904
    %v975 = vpop.f32.mrb[0].mxu0
    %v976 = vadd.f32 %v908, %v975
    %v977 = vpop.f32.mrb[0].mxu0
    %978 = vdwg.mxu0
    %979 = vst [vmem:[%s4] sm:$0xff] %v976
    // Predicated region
    $region22: #{lstm_model_forward.1} parent=1 // pred_check
      _
    $region23: #{lstm_model_forward.1} parent=1 // pred_check_branch
      %981 = sbr.rel (0) target = $region25
    $region24: #{lstm_model_forward.1} parent=1 // pred_region
      _
    $region25: #{lstm_model_forward.1} parent=1 // pred_fallthru
      _
    // Predicated region
    $region26: #{lstm_model_forward.1} parent=1 // pred_check
      _
    $region27: #{lstm_model_forward.1} parent=1 // pred_check_branch
      %983 = sbr.rel (0) target = $region29
    $region28: #{lstm_model_forward.1} parent=1 // pred_region
      _
    $region29: #{lstm_model_forward.1} parent=1 // pred_fallthru
      _
    %984 = vsyncpa [#allocation3], 1

</llo_original>
